<compile_context>
chip_gen: v6e
topology: v6e:2x2x1
jax: 0.10.0
libtpu: 0.0.40
codegen_flags: <defaults>
</compile_context>

<pallas_src>
import jax
import jax.numpy as jnp
from jax.experimental import pallas as pl
from jax.experimental.pallas import tpu as pltpu


def _make_decoder_kernel(compute_dtype):
    def kernel(zt_ref, w1_ref, b1_ref, w2_ref, b2_ref, w3_ref, b3_ref, ot_ref):
        # All operands are tiny except the activation tile; load once per step.
        zt = zt_ref[...].astype(compute_dtype)          # (latent, B_tile)
        w1 = w1_ref[...].astype(compute_dtype)          # (hidden, latent)
        w2 = w2_ref[...].astype(compute_dtype)          # (hidden, hidden)
        w3 = w3_ref[...].astype(compute_dtype)          # (output, hidden)
        b1 = b1_ref[...]                                 # (hidden, 1) f32
        b2 = b2_ref[...]                                 # (hidden, 1) f32
        b3 = b3_ref[...]                                 # (output, 1) f32

        # y^T = W @ x^T per layer; batch stays on the lane axis throughout.
        h1 = jnp.tanh(jnp.dot(w1, zt, preferred_element_type=jnp.float32) + b1)
        h2 = jnp.tanh(
            jnp.dot(w2, h1.astype(compute_dtype),
                    preferred_element_type=jnp.float32) + b2)
        ot = jnp.dot(w3, h2.astype(compute_dtype),
                     preferred_element_type=jnp.float32) + b3
        ot_ref[...] = ot.astype(ot_ref.dtype)            # lane-dense store

    return kernel


def _pick_batch_tile(B, *, target_steps=2, max_tile=1024):
    """Pick a lane-axis batch tile: a multiple of 128 that divides B, aiming
    for ~target_steps grid steps (2 keeps both v7x TCs busy).  Falls back to
    the full batch (always a legal full-array block)."""
    if B % 128 != 0:
        return B
    cand = B // target_steps if B % target_steps == 0 else 0
    if cand >= 128 and cand % 128 == 0 and cand <= max_tile:
        return cand
    # largest multiple of 128 dividing B that is <= max_tile
    t = (min(max_tile, B) // 128) * 128
    while t >= 128 and B % t != 0:
        t -= 128
    return t if t >= 128 else B


def decoder_subnet_forward(z, params, *, batch_tile=None,
                           compute_dtype=jnp.float32):
    """Pallas forward of DecoderSubnet.

    params = (w1, b1, w2, b2, w3, b3) with PyTorch-native weight layout
    (out_features, in_features) and biases shaped (out_features, 1).
    """
    w1, b1, w2, b2, w3, b3 = params
    B, latent_dim = z.shape
    hidden_dim = w1.shape[0]
    output_dim = w3.shape[0]

    if batch_tile is None:
        batch_tile = _pick_batch_tile(B)
    assert B % batch_tile == 0, "batch_tile must divide the batch"
    assert batch_tile == B or batch_tile % 128 == 0, \
        "batch_tile must be a multiple of 128 lanes (or the full batch)"
    grid = (B // batch_tile,)

    # One-time transpose so the batch rides the lane axis inside the kernel.
    zt = z.T                                              # (latent_dim, B)

    const = lambda i: (0, 0)
    in_specs = [
        pl.BlockSpec((latent_dim, batch_tile), lambda i: (0, i)),   # z^T tiled over batch
        pl.BlockSpec((hidden_dim, latent_dim), const),
        pl.BlockSpec((hidden_dim, 1), const),
        pl.BlockSpec((hidden_dim, hidden_dim), const),
        pl.BlockSpec((hidden_dim, 1), const),
        pl.BlockSpec((output_dim, hidden_dim), const),
        pl.BlockSpec((output_dim, 1), const),
    ]
    out_spec = pl.BlockSpec((output_dim, batch_tile), lambda i: (0, i))

    out_t = pl.pallas_call(
        _make_decoder_kernel(compute_dtype),
        out_shape=jax.ShapeDtypeStruct((output_dim, B), z.dtype),
        grid_spec=pltpu.PrefetchScalarGridSpec(
            num_scalar_prefetch=0,
            grid=grid,
            in_specs=in_specs,
            out_specs=out_spec,
        ),
        compiler_params=pltpu.CompilerParams(
            # Independent batch tiles -> megacore sharding on v7x.
            dimension_semantics=("parallel",),
        ),
    )(zt, w1, b1, w2, b2, w3, b3)

    return out_t.T                                        # back to (B, output_dim)


def init_params(key, latent_dim, hidden_dim, output_dim):
    """Deterministic init mimicking nn.Linear (uniform +/- 1/sqrt(fan_in)).
    Weights are PyTorch-native (out, in); biases are (out, 1)."""
    ks = jax.random.split(key, 6)

    def linear(kw, kb, fan_in, fan_out):
        bound = 1.0 / jnp.sqrt(fan_in)
        w = jax.random.uniform(kw, (fan_out, fan_in), jnp.float32, -bound, bound)
        b = jax.random.uniform(kb, (fan_out, 1), jnp.float32, -bound, bound)
        return w, b

    w1, b1 = linear(ks[0], ks[1], latent_dim, hidden_dim)
    w2, b2 = linear(ks[2], ks[3], hidden_dim, hidden_dim)
    w3, b3 = linear(ks[4], ks[5], hidden_dim, output_dim)
    return (w1, b1, w2, b2, w3, b3)


if __name__ == "__main__":
    # Module-implied shapes: z is (batch, latent_dim).  Feature dims stay
    # small (as in the VAE subnet); batch=1024 -> tile=512 lanes, grid=(2,).
    batch, latent_dim, hidden_dim, output_dim = 1024, 8, 32, 16

    key = jax.random.PRNGKey(0)
    kz, kp = jax.random.split(key)
    z = jax.random.normal(kz, (batch, latent_dim), jnp.float32)
    params = init_params(kp, latent_dim, hidden_dim, output_dim)
    w1, b1, w2, b2, w3, b3 = params

    # --- default exact f32 path (matches the PyTorch module's numerics) ---
    out_f32 = jax.block_until_ready(decoder_subnet_forward(z, params))
    ref = jnp.tanh(z @ w1.T + b1.T)
    ref = jnp.tanh(ref @ w2.T + b2.T)
    ref = ref @ w3.T + b3.T
    assert out_f32.shape == (batch, output_dim)
    assert jnp.allclose(out_f32, ref, atol=1e-5, rtol=1e-5)

    # --- optional bf16-dot-inputs / f32-accumulation path ---
    out_bf16 = jax.block_until_ready(
        decoder_subnet_forward(z, params, compute_dtype=jnp.bfloat16))

    def dot_bf16(a, w):
        return jnp.dot(a.astype(jnp.bfloat16), w.astype(jnp.bfloat16),
                       preferred_element_type=jnp.float32)

    ref_bf16 = jnp.tanh(dot_bf16(z, w1.T) + b1.T)
    ref_bf16 = jnp.tanh(dot_bf16(ref_bf16, w2.T) + b2.T)
    ref_bf16 = dot_bf16(ref_bf16, w3.T) + b3.T
    assert out_bf16.shape == (batch, output_dim)
    assert jnp.allclose(out_bf16, ref_bf16, atol=2e-3, rtol=2e-3)

    print("KERNEL_OK")
</pallas_src>

<mosaic_0001>
module attributes {stable_mosaic.version = 11 : i64} {
  func.func @kernel(%arg0: i32, %arg1: memref<8x512xf32, #tpu.memory_space<vmem>>, %arg2: memref<32x8xf32, #tpu.memory_space<vmem>>, %arg3: memref<32x1xf32, #tpu.memory_space<vmem>>, %arg4: memref<32x32xf32, #tpu.memory_space<vmem>>, %arg5: memref<32x1xf32, #tpu.memory_space<vmem>>, %arg6: memref<16x32xf32, #tpu.memory_space<vmem>>, %arg7: memref<16x1xf32, #tpu.memory_space<vmem>>, %arg8: memref<16x512xf32, #tpu.memory_space<vmem>>) attributes {dimension_semantics = [#tpu.dimension_semantics<parallel>], iteration_bounds = array<i64: 2>, scalar_prefetch = 0 : i64, scratch_operands = 0 : i64, tpu.core_type = #tpu.core_type<tc>, window_params = [{transform_indices = @transform_0, window_bounds = array<i64: 8, 512>}, {pipeline_mode = #tpu.pipeline_mode<synchronous>, transform_indices = @transform_1, window_bounds = array<i64: 32, 8>}, {pipeline_mode = #tpu.pipeline_mode<synchronous>, transform_indices = @transform_2, window_bounds = array<i64: 32, 1>}, {pipeline_mode = #tpu.pipeline_mode<synchronous>, transform_indices = @transform_3, window_bounds = array<i64: 32, 32>}, {pipeline_mode = #tpu.pipeline_mode<synchronous>, transform_indices = @transform_4, window_bounds = array<i64: 32, 1>}, {pipeline_mode = #tpu.pipeline_mode<synchronous>, transform_indices = @transform_5, window_bounds = array<i64: 16, 32>}, {pipeline_mode = #tpu.pipeline_mode<synchronous>, transform_indices = @transform_6, window_bounds = array<i64: 16, 1>}, {transform_indices = @transform_7, window_bounds = array<i64: 16, 512>}]} {
    %c0 = arith.constant 0 : index
    %c0_0 = arith.constant 0 : index
    %0 = vector.load %arg1[%c0, %c0_0] : memref<8x512xf32, #tpu.memory_space<vmem>>, vector<8x512xf32>
    %c0_1 = arith.constant 0 : index
    %c0_2 = arith.constant 0 : index
    %1 = vector.load %arg2[%c0_1, %c0_2] : memref<32x8xf32, #tpu.memory_space<vmem>>, vector<32x8xf32>
    %c0_3 = arith.constant 0 : index
    %c0_4 = arith.constant 0 : index
    %2 = vector.load %arg4[%c0_3, %c0_4] : memref<32x32xf32, #tpu.memory_space<vmem>>, vector<32x32xf32>
    %c0_5 = arith.constant 0 : index
    %c0_6 = arith.constant 0 : index
    %3 = vector.load %arg6[%c0_5, %c0_6] : memref<16x32xf32, #tpu.memory_space<vmem>>, vector<16x32xf32>
    %c0_7 = arith.constant 0 : index
    %c0_8 = arith.constant 0 : index
    %4 = vector.load %arg3[%c0_7, %c0_8] : memref<32x1xf32, #tpu.memory_space<vmem>>, vector<32x1xf32>
    %c0_9 = arith.constant 0 : index
    %c0_10 = arith.constant 0 : index
    %5 = vector.load %arg5[%c0_9, %c0_10] : memref<32x1xf32, #tpu.memory_space<vmem>>, vector<32x1xf32>
    %c0_11 = arith.constant 0 : index
    %c0_12 = arith.constant 0 : index
    %6 = vector.load %arg7[%c0_11, %c0_12] : memref<16x1xf32, #tpu.memory_space<vmem>>, vector<16x1xf32>
    %cst = arith.constant dense<0.000000e+00> : vector<32x512xf32>
    %7 = tpu.matmul %1, %0, %cst {dimension_numbers = #tpu.dot_dimension_numbers<[1], [0], [0], [1], [0, 0, 1, 1], [], []>} : vector<32x8xf32>, vector<8x512xf32>, vector<32x512xf32> -> vector<32x512xf32>
    %8 = vector.broadcast %4 : vector<32x1xf32> to vector<32x512xf32>
    %9 = arith.addf %7, %8 : vector<32x512xf32>
    %10 = math.tanh %9 : vector<32x512xf32>
    %cst_13 = arith.constant dense<0.000000e+00> : vector<32x512xf32>
    %11 = tpu.matmul %2, %10, %cst_13 {dimension_numbers = #tpu.dot_dimension_numbers<[1], [0], [0], [1], [0, 0, 1, 1], [], []>} : vector<32x32xf32>, vector<32x512xf32>, vector<32x512xf32> -> vector<32x512xf32>
    %12 = vector.broadcast %5 : vector<32x1xf32> to vector<32x512xf32>
    %13 = arith.addf %11, %12 : vector<32x512xf32>
    %14 = math.tanh %13 : vector<32x512xf32>
    %cst_14 = arith.constant dense<0.000000e+00> : vector<16x512xf32>
    %15 = tpu.matmul %3, %14, %cst_14 {dimension_numbers = #tpu.dot_dimension_numbers<[1], [0], [0], [1], [0, 0, 1, 1], [], []>} : vector<16x32xf32>, vector<32x512xf32>, vector<16x512xf32> -> vector<16x512xf32>
    %16 = vector.broadcast %6 : vector<16x1xf32> to vector<16x512xf32>
    %17 = arith.addf %15, %16 : vector<16x512xf32>
    %c0_15 = arith.constant 0 : index
    %c0_16 = arith.constant 0 : index
    %18 = vector.load %arg8[%c0_15, %c0_16] : memref<16x512xf32, #tpu.memory_space<vmem>>, vector<16x512xf32>
    tpu.vector_store %arg8[%c0_15, %c0_16], %17 {strides = array<i32>} : memref<16x512xf32, #tpu.memory_space<vmem>>, vector<16x512xf32>,
    return
  }
  func.func @transform_0(%arg0: i32) -> (i32, i32) {
    %c0_i32 = arith.constant 0 : i32
    %c0_i32_0 = arith.constant 0 : i32
    return %c0_i32, %arg0 : i32, i32
  }
  func.func @transform_1(%arg0: i32) -> (i32, i32) {
    %c0_i32 = arith.constant 0 : i32
    %c0_i32_0 = arith.constant 0 : i32
    %c0_i32_1 = arith.constant 0 : i32
    return %c0_i32, %c0_i32_0 : i32, i32
  }
  func.func @transform_2(%arg0: i32) -> (i32, i32) {
    %c0_i32 = arith.constant 0 : i32
    %c0_i32_0 = arith.constant 0 : i32
    %c0_i32_1 = arith.constant 0 : i32
    return %c0_i32, %c0_i32_0 : i32, i32
  }
  func.func @transform_3(%arg0: i32) -> (i32, i32) {
    %c0_i32 = arith.constant 0 : i32
    %c0_i32_0 = arith.constant 0 : i32
    %c0_i32_1 = arith.constant 0 : i32
    return %c0_i32, %c0_i32_0 : i32, i32
  }
  func.func @transform_4(%arg0: i32) -> (i32, i32) {
    %c0_i32 = arith.constant 0 : i32
    %c0_i32_0 = arith.constant 0 : i32
    %c0_i32_1 = arith.constant 0 : i32
    return %c0_i32, %c0_i32_0 : i32, i32
  }
  func.func @transform_5(%arg0: i32) -> (i32, i32) {
    %c0_i32 = arith.constant 0 : i32
    %c0_i32_0 = arith.constant 0 : i32
    %c0_i32_1 = arith.constant 0 : i32
    return %c0_i32, %c0_i32_0 : i32, i32
  }
  func.func @transform_6(%arg0: i32) -> (i32, i32) {
    %c0_i32 = arith.constant 0 : i32
    %c0_i32_0 = arith.constant 0 : i32
    %c0_i32_1 = arith.constant 0 : i32
    return %c0_i32, %c0_i32_0 : i32, i32
  }
  func.func @transform_7(%arg0: i32) -> (i32, i32) {
    %c0_i32 = arith.constant 0 : i32
    %c0_i32_0 = arith.constant 0 : i32
    return %c0_i32, %arg0 : i32, i32
  }
}

</mosaic_0001>

<llo_original>
// kernel: tpu_custom_call.1
$region0: #{tpu_custom_call.1}
  #allocation0 [shape = 'u32[]', space=smem, size = 0x4, offset = 0x4, fixed_abs, tag = 'smem constant byte address 0x4 - core index']
  #allocation1 [shape = 'u32[144,128]{1,0:T(1,128)}', space=vmem, size = 0x12000, scoped, tag = 'internal scratch']
  %s0 = inlined_call_operand.vmem [shape: f32[8,1024], index: 0, kind: input, shape index: {}]
  %s1 = inlined_call_operand.vmem [shape: f32[32,8], index: 1, kind: input, shape index: {}]
  %s2 = inlined_call_operand.vmem [shape: f32[32,1], index: 2, kind: input, shape index: {}]
  %s3 = inlined_call_operand.vmem [shape: f32[32,32], index: 3, kind: input, shape index: {}]
  %s4 = inlined_call_operand.vmem [shape: f32[32,1], index: 4, kind: input, shape index: {}]
  %s5 = inlined_call_operand.vmem [shape: f32[16,32], index: 5, kind: input, shape index: {}]
  %s6 = inlined_call_operand.vmem [shape: f32[16,1], index: 6, kind: input, shape index: {}]
  %s7 = inlined_call_operand.hbm [shape: f32[16,1024], index: 7, kind: output, shape index: {}]
  %s8 = sld [smem:[#allocation0]]
  $region61: #{tpu_custom_call.1} parent=0
    _
  %s10 = ssub.s32 1, %s8
  %s11 = scalar_select 0, %s10, %s8
  $region1: #{tpu_custom_call.1} parent=0
    #allocation2 [shape = 'u8[65536]{0}', space=vmem, size = 0x10000, scoped, tag = 'output window, operand 0']
    #allocation3 [shape = 's32[2]{0}', space=sflag, size = 0x8, scoped, tag = 'scoped memory for tpu_custom_call.1']
    %12 = vsyncpa [#allocation3], 0
    %s13 = scalar_lea.sflag [#allocation3], 1
    %14 = vsyncpa %s13, 0
    loop: start=0, step=1, limit=4
    $region2: #{tpu_custom_call.1} parent=1 // loop_pre_header
      _
    $region3: #{tpu_custom_call.1} parent=1 // loop_header
      %s16 = sphi 0, %s20
      %p17 = scmp.ge.s32.totalorder %s16, 4
      %s26 = sphi 0, %s28
      %s29 = sphi 0, %s26
      %s30 = sphi 0, %s29
      %s46 = sphi 0, %s30
      %s50 = sphi 0, %s50
      %s52 = sphi 0, %s50
      %s53 = sphi 0, %s52
      %s67 = sphi 0, %s53
      %s71 = sphi 0, %s71
      %s73 = sphi 0, %s71
      %s74 = sphi 0, %s73
      %s88 = sphi 0, %s74
      %s92 = sphi 0, %s92
      %s94 = sphi 0, %s92
      %s95 = sphi 0, %s94
      %s109 = sphi 0, %s95
      %s113 = sphi 0, %s113
      %s115 = sphi 0, %s113
      %s116 = sphi 0, %s115
      %s130 = sphi 0, %s116
      %s134 = sphi 0, %s134
      %s136 = sphi 0, %s134
      %s137 = sphi 0, %s136
      %s151 = sphi 0, %s137
      %s155 = sphi 0, %s155
      %s157 = sphi 0, %s155
      %s158 = sphi 0, %s157
      %s172 = sphi 0, %s158
      %s178 = sphi 0, %s180
      %s181 = sphi 0, %s178
      %s182 = sphi 0, %s181
      %s198 = sphi 0, %s182
    $region4: #{tpu_custom_call.1} parent=1 // loop_header_branch
      %19 = sbr.rel (%p17) target = $region8
    $region5: #{tpu_custom_call.1} parent=1 // loop_body
      %s21 = ssub.s32 %s16, 1
      %s22 = ssub.s32 %s16, 2
      %s23 = sadd.s32 %s16, 1
      %s24 = ssub.s32 %s16, %s23
      %p25 = scmp.eq.s32.totalorder %s24, 0
      %s27 = sadd.s32 %s26, 1
      %s28 = scalar_select %p25, %s26, %s27
      %p31 = pneg %p25
      %p32 = scmp.eq.s32.totalorder %s16, 1
      %p33 = por %p31, %p32
      %p34 = scmp.ne.s32.totalorder %s26, %s29
      %p35 = scmp.eq.s32.totalorder %s16, 0
      %p36 = por %p34, %p35
      %p37 = scmp.ne.s32.totalorder %s26, %s29
      %p38 = scmp.eq.s32.totalorder %s21, 1
      %p39 = por %p37, %p38
      %p40 = scmp.ne.s32.totalorder %s29, %s30
      %p41 = scmp.eq.s32.totalorder %s21, 0
      %p42 = por %p40, %p41
      %p43 = scmp.ne.s32.totalorder %s29, %s30
      %p44 = scmp.eq.s32.totalorder %s22, 1
      %p45 = por %p43, %p44
      %p47 = scmp.ne.s32.totalorder %s30, %s46
      %p48 = scmp.eq.s32.totalorder %s22, 0
      %p49 = por %p47, %p48
      %s51 = sadd.s32 %s50, 1
      %p54 = scmp.eq.s32.totalorder %s16, 1
      %p55 = scmp.ne.s32.totalorder %s50, %s52
      %p56 = scmp.eq.s32.totalorder %s16, 0
      %p57 = por %p55, %p56
      %p58 = scmp.ne.s32.totalorder %s50, %s52
      %p59 = scmp.eq.s32.totalorder %s21, 1
      %p60 = por %p58, %p59
      %p61 = scmp.ne.s32.totalorder %s52, %s53
      %p62 = scmp.eq.s32.totalorder %s21, 0
      %p63 = por %p61, %p62
      %p64 = scmp.ne.s32.totalorder %s52, %s53
      %p65 = scmp.eq.s32.totalorder %s22, 1
      %p66 = por %p64, %p65
      %p68 = scmp.ne.s32.totalorder %s53, %s67
      %p69 = scmp.eq.s32.totalorder %s22, 0
      %p70 = por %p68, %p69
      %s72 = sadd.s32 %s71, 1
      %p75 = scmp.eq.s32.totalorder %s16, 1
      %p76 = scmp.ne.s32.totalorder %s71, %s73
      %p77 = scmp.eq.s32.totalorder %s16, 0
      %p78 = por %p76, %p77
      %p79 = scmp.ne.s32.totalorder %s71, %s73
      %p80 = scmp.eq.s32.totalorder %s21, 1
      %p81 = por %p79, %p80
      %p82 = scmp.ne.s32.totalorder %s73, %s74
      %p83 = scmp.eq.s32.totalorder %s21, 0
      %p84 = por %p82, %p83
      %p85 = scmp.ne.s32.totalorder %s73, %s74
      %p86 = scmp.eq.s32.totalorder %s22, 1
      %p87 = por %p85, %p86
      %p89 = scmp.ne.s32.totalorder %s74, %s88
      %p90 = scmp.eq.s32.totalorder %s22, 0
      %p91 = por %p89, %p90
      %s93 = sadd.s32 %s92, 1
      %p96 = scmp.eq.s32.totalorder %s16, 1
      %p97 = scmp.ne.s32.totalorder %s92, %s94
      %p98 = scmp.eq.s32.totalorder %s16, 0
      %p99 = por %p97, %p98
      %p100 = scmp.ne.s32.totalorder %s92, %s94
      %p101 = scmp.eq.s32.totalorder %s21, 1
      %p102 = por %p100, %p101
      %p103 = scmp.ne.s32.totalorder %s94, %s95
      %p104 = scmp.eq.s32.totalorder %s21, 0
      %p105 = por %p103, %p104
      %p106 = scmp.ne.s32.totalorder %s94, %s95
      %p107 = scmp.eq.s32.totalorder %s22, 1
      %p108 = por %p106, %p107
      %p110 = scmp.ne.s32.totalorder %s95, %s109
      %p111 = scmp.eq.s32.totalorder %s22, 0
      %p112 = por %p110, %p111
      %s114 = sadd.s32 %s113, 1
      %p117 = scmp.eq.s32.totalorder %s16, 1
      %p118 = scmp.ne.s32.totalorder %s113, %s115
      %p119 = scmp.eq.s32.totalorder %s16, 0
      %p120 = por %p118, %p119
      %p121 = scmp.ne.s32.totalorder %s113, %s115
      %p122 = scmp.eq.s32.totalorder %s21, 1
      %p123 = por %p121, %p122
      %p124 = scmp.ne.s32.totalorder %s115, %s116
      %p125 = scmp.eq.s32.totalorder %s21, 0
      %p126 = por %p124, %p125
      %p127 = scmp.ne.s32.totalorder %s115, %s116
      %p128 = scmp.eq.s32.totalorder %s22, 1
      %p129 = por %p127, %p128
      %p131 = scmp.ne.s32.totalorder %s116, %s130
      %p132 = scmp.eq.s32.totalorder %s22, 0
      %p133 = por %p131, %p132
      %s135 = sadd.s32 %s134, 1
      %p138 = scmp.eq.s32.totalorder %s16, 1
      %p139 = scmp.ne.s32.totalorder %s134, %s136
      %p140 = scmp.eq.s32.totalorder %s16, 0
      %p141 = por %p139, %p140
      %p142 = scmp.ne.s32.totalorder %s134, %s136
      %p143 = scmp.eq.s32.totalorder %s21, 1
      %p144 = por %p142, %p143
      %p145 = scmp.ne.s32.totalorder %s136, %s137
      %p146 = scmp.eq.s32.totalorder %s21, 0
      %p147 = por %p145, %p146
      %p148 = scmp.ne.s32.totalorder %s136, %s137
      %p149 = scmp.eq.s32.totalorder %s22, 1
      %p150 = por %p148, %p149
      %p152 = scmp.ne.s32.totalorder %s137, %s151
      %p153 = scmp.eq.s32.totalorder %s22, 0
      %p154 = por %p152, %p153
      %s156 = sadd.s32 %s155, 1
      %p159 = scmp.eq.s32.totalorder %s16, 1
      %p160 = scmp.ne.s32.totalorder %s155, %s157
      %p161 = scmp.eq.s32.totalorder %s16, 0
      %p162 = por %p160, %p161
      %p163 = scmp.ne.s32.totalorder %s155, %s157
      %p164 = scmp.eq.s32.totalorder %s21, 1
      %p165 = por %p163, %p164
      %p166 = scmp.ne.s32.totalorder %s157, %s158
      %p167 = scmp.eq.s32.totalorder %s21, 0
      %p168 = por %p166, %p167
      %p169 = scmp.ne.s32.totalorder %s157, %s158
      %p170 = scmp.eq.s32.totalorder %s22, 1
      %p171 = por %p169, %p170
      %p173 = scmp.ne.s32.totalorder %s158, %s172
      %p174 = scmp.eq.s32.totalorder %s22, 0
      %p175 = por %p173, %p174
      %s176 = ssub.s32 %s16, %s23
      %p177 = scmp.eq.s32.totalorder %s176, 0
      %s179 = sadd.s32 %s178, 1
      %s180 = scalar_select %p177, %s178, %s179
      %p183 = pneg %p177
      %p184 = scmp.eq.s32.totalorder %s16, 1
      %p185 = por %p183, %p184
      %p186 = scmp.ne.s32.totalorder %s178, %s181
      %p187 = scmp.eq.s32.totalorder %s16, 0
      %p188 = por %p186, %p187
      %p189 = scmp.ne.s32.totalorder %s178, %s181
      %p190 = scmp.eq.s32.totalorder %s21, 1
      %p191 = por %p189, %p190
      %p192 = scmp.ne.s32.totalorder %s181, %s182
      %p193 = scmp.eq.s32.totalorder %s21, 0
      %p194 = por %p192, %p193
      %p195 = scmp.ne.s32.totalorder %s181, %s182
      %p196 = scmp.eq.s32.totalorder %s22, 1
      %p197 = por %p195, %p196
      %p199 = scmp.ne.s32.totalorder %s182, %s198
      %p200 = scmp.eq.s32.totalorder %s22, 0
      %p201 = por %p199, %p200
      %p202 = scmp.le.s32.totalorder 1, %s16
      %p203 = scmp.lt.s32.totalorder %s16, 3
      %p204 = pnand %p202, %p203
      %p205 = pneg %p204
      // Predicated region
      $region9: #{tpu_custom_call.1} parent=5 // pred_check
        _
      $region10: #{tpu_custom_call.1} parent=5 // pred_check_branch
        %207 = sbr.rel (%p204) target = $region12
      $region11: #{tpu_custom_call.1} parent=5 // pred_region
        %s208 = ssub.s32 %s16, 1
        // Predicated region
        $region13: #{tpu_custom_call.1} parent=11 // pred_check
          %p209 = pneg %p63
        $region14: #{tpu_custom_call.1} parent=11 // pred_check_branch
          %211 = sbr.rel (%p209) target = $region16
        $region15: #{tpu_custom_call.1} parent=11 // pred_region
          _
        $region16: #{tpu_custom_call.1} parent=11 // pred_fallthru
          _
        // Predicated region
        $region17: #{tpu_custom_call.1} parent=11 // pred_check
          %p212 = pneg %p84
        $region18: #{tpu_custom_call.1} parent=11 // pred_check_branch
          %214 = sbr.rel (%p212) target = $region20
        $region19: #{tpu_custom_call.1} parent=11 // pred_region
          _
        $region20: #{tpu_custom_call.1} parent=11 // pred_fallthru
          _
        // Predicated region
        $region21: #{tpu_custom_call.1} parent=11 // pred_check
          %p215 = pneg %p105
        $region22: #{tpu_custom_call.1} parent=11 // pred_check_branch
          %217 = sbr.rel (%p215) target = $region24
        $region23: #{tpu_custom_call.1} parent=11 // pred_region
          _
        $region24: #{tpu_custom_call.1} parent=11 // pred_fallthru
          _
        // Predicated region
        $region25: #{tpu_custom_call.1} parent=11 // pred_check
          %p218 = pneg %p126
        $region26: #{tpu_custom_call.1} parent=11 // pred_check_branch
          %220 = sbr.rel (%p218) target = $region28
        $region27: #{tpu_custom_call.1} parent=11 // pred_region
          _
        $region28: #{tpu_custom_call.1} parent=11 // pred_fallthru
          _
        // Predicated region
        $region29: #{tpu_custom_call.1} parent=11 // pred_check
          %p221 = pneg %p147
        $region30: #{tpu_custom_call.1} parent=11 // pred_check_branch
          %223 = sbr.rel (%p221) target = $region32
        $region31: #{tpu_custom_call.1} parent=11 // pred_region
          _
        $region32: #{tpu_custom_call.1} parent=11 // pred_fallthru
          _
        // Predicated region
        $region33: #{tpu_custom_call.1} parent=11 // pred_check
          %p224 = pneg %p168
        $region34: #{tpu_custom_call.1} parent=11 // pred_check_branch
          %226 = sbr.rel (%p224) target = $region36
        $region35: #{tpu_custom_call.1} parent=11 // pred_region
          _
        $region36: #{tpu_custom_call.1} parent=11 // pred_fallthru
          _
      $region12: #{tpu_custom_call.1} parent=5 // pred_fallthru
        _
      %p227 = scmp.lt.s32.totalorder %s16, 2
      // Predicated region
      $region37: #{tpu_custom_call.1} parent=5 // pred_check
        %p228 = pneg %p227
      $region38: #{tpu_custom_call.1} parent=5 // pred_check_branch
        %230 = sbr.rel (%p228) target = $region40
      $region39: #{tpu_custom_call.1} parent=5 // pred_region
        // Predicated region
        $region41: #{tpu_custom_call.1} parent=39 // pred_check
          %p231 = pneg %p36
        $region42: #{tpu_custom_call.1} parent=39 // pred_check_branch
          %233 = sbr.rel (%p231) target = $region44
        $region43: #{tpu_custom_call.1} parent=39 // pred_region
          %s234 = smul.u32 4, %s16
          %p235 = scmp.lt.s32.totalorder %s234, 7
          %s236 = scalar_select %p235, %s234, 7
          %s237 = smul.addr %s236, 8
          %s238 = scalar_lea.vmem %s0, %s237
          %s239 = smul.u32 4, %s16
        $region44: #{tpu_custom_call.1} parent=39 // pred_fallthru
          _
      $region40: #{tpu_custom_call.1} parent=5 // pred_fallthru
        _
      %p240 = scmp.le.s32.totalorder 1, %s16
      %p241 = scmp.lt.s32.totalorder %s16, 3
      %p242 = pnand %p240, %p241
      %p243 = pneg %p242
      // Predicated region
      $region45: #{tpu_custom_call.1} parent=5 // pred_check
        _
      $region46: #{tpu_custom_call.1} parent=5 // pred_check_branch
        %245 = sbr.rel (%p242) target = $region48
      $region47: #{tpu_custom_call.1} parent=5 // pred_region
        %s246 = ssub.s32 %s16, 1
        %s247 = smul.u32 4, %s21
        %p248 = scmp.lt.s32.totalorder %s247, 7
        %s249 = scalar_select %p248, %s247, 7
        %s250 = smul.addr %s249, 8
        %s251 = scalar_lea.vmem %s0, %s250
        %p252 = pneg %p42
        %p253 = pneg %p39
        %p254 = pneg %p63
        %p255 = pneg %p60
        %p256 = pneg %p84
        %p257 = pneg %p81
        %p258 = pneg %p105
        %p259 = pneg %p102
        %p260 = pneg %p126
        %p261 = pneg %p123
        %p262 = pneg %p147
        %p263 = pneg %p144
        %p264 = pneg %p168
        %p265 = pneg %p165
        %p266 = pneg %p194
        %p267 = pneg %p191
        %s268 = sand.u32 %s181, 1
        %s269 = scalar_lea.sflag [#allocation3], %s268
        %s270 = sand.u32 %s181, 1
        %s271 = smul.addr %s270, 64
        %s272 = scalar_lea.vmem [#allocation2], %s271
        %s273 = smul.u32 4, %s21
        %p274 = scmp.lt.s32.totalorder %s273, 7
        %s275 = scalar_select %p274, %s273, 7
        %s276 = smul.addr %s275, 8
        %s277 = scalar_lea.vmem %s0, %s276
        %s278 = smul.u32 4, %s21
        %s279 = smul.u32 4, %s21
        %v280 = vld [vmem:[%s277] sm:$0xff]
        %v281 = vld [vmem:[%s277 + $0x8] sm:$0xff]
        %v282 = vld [vmem:[%s277 + $0x10] sm:$0xff]
        %v283 = vld [vmem:[%s277 + $0x18] sm:$0xff]
        %v284 = vld [vmem:[%s1] sm:$0xff]
        %v285 = vld [vmem:[%s1 + $0x8] sm:$0xff]
        %v286 = vld [vmem:[%s1 + $0x10] sm:$0xff]
        %v287 = vld [vmem:[%s1 + $0x18] sm:$0xff]
        %v288 = vld [vmem:[%s3] sm:$0xff]
        %v289 = vld [vmem:[%s3 + $0x8] sm:$0xff]
        %v290 = vld [vmem:[%s3 + $0x10] sm:$0xff]
        %v291 = vld [vmem:[%s3 + $0x18] sm:$0xff]
        %v292 = vld [vmem:[%s5] sm:$0xff]
        %v293 = vld [vmem:[%s5 + $0x8] sm:$0xff]
        %v294 = vld [vmem:[%s2] sm:$0xff]
        %v295 = vld [vmem:[%s2 + $0x8] sm:$0xff]
        %v296 = vld [vmem:[%s2 + $0x10] sm:$0xff]
        %v297 = vld [vmem:[%s2 + $0x18] sm:$0xff]
        %v298 = vld [vmem:[%s4] sm:$0xff]
        %v299 = vld [vmem:[%s4 + $0x8] sm:$0xff]
        %v300 = vld [vmem:[%s4 + $0x10] sm:$0xff]
        %v301 = vld [vmem:[%s4 + $0x18] sm:$0xff]
        %v302 = vld [vmem:[%s6] sm:$0xff]
        %v303 = vld [vmem:[%s6 + $0x8] sm:$0xff]
        %305 = vset.pattern.permute.xlu0 0
        %306 = vperm.xlu0 %305, %v294
        %v307 = vpop.permute.xlu0 %306
        %310 = vset.pattern.permute.xlu0 0
        %311 = vperm.xlu0 %310, %v295
        %v312 = vpop.permute.xlu0 %311
        %315 = vset.pattern.permute.xlu0 0
        %316 = vperm.xlu0 %315, %v296
        %v317 = vpop.permute.xlu0 %316
        %320 = vset.pattern.permute.xlu0 0
        %321 = vperm.xlu0 %320, %v297
        %v322 = vpop.permute.xlu0 %321
        %vm324 = vcmask 64512
        %v326 = vsel %vm324, %v284, 0
        %v329 = vsel %vm324, %v285, 0
        %v332 = vsel %vm324, %v286, 0
        %v335 = vsel %vm324, %v287, 0
        %337 = vmatprep.subr.mxu0 0.0
        %338 = vmatpush1.msra.mxu0 0.0
        %339 = vmatprep.subr.mxu0 0.0
        %340 = vmatpush1.msra.mxu0 0.0
        %341 = vmatprep.subr.mxu0 0.0
        %342 = vmatpush1.msra.mxu0 0.0
        %343 = vmatprep.subr.mxu0 0.0
        %344 = vmatpush1.msra.mxu0 0.0
        %345 = vmatprep.subr.mxu0 0.0
        %346 = vmatpush1.msra.mxu0 0.0
        %347 = vmatprep.subr.mxu0 0.0
        %348 = vmatpush1.msra.mxu0 0.0
        %349 = vmatprep.subr.mxu0 0.0
        %350 = vmatpush1.msra.mxu0 0.0
        %351 = vmatprep.subr.mxu0 0.0
        %352 = vmatpush1.msra.mxu0 0.0
        %353 = vmatprep.subr.mxu0 0.0
        %354 = vmatpush1.msra.mxu0 0.0
        %355 = vmatprep.subr.mxu0 0.0
        %356 = vmatpush1.msra.mxu0 0.0
        %357 = vmatprep.subr.mxu0 0.0
        %358 = vmatpush1.msra.mxu0 0.0
        %359 = vmatprep.subr.mxu0 0.0
        %360 = vmatpush1.msra.mxu0 0.0
        %361 = vmatprep.subr.mxu0 0.0
        %362 = vmatpush1.msra.mxu0 0.0
        %363 = vmatprep.subr.mxu0 0.0
        %364 = vmatpush1.msra.mxu0 0.0
        %365 = vmatprep.subr.mxu0 0.0
        %366 = vmatpush1.msra.mxu0 0.0
        %367 = vmatprep.subr.mxu0 %v281
        %368 = vmatpush1.msra.mxu0 %v280
        %369 = vmatprep.subr.mxu0 0.0
        %370 = vmatpush2.msra.mxu0 0.0
        %371 = vmatprep.subr.mxu0 0.0
        %372 = vmatpush2.msra.mxu0 0.0
        %373 = vmatprep.subr.mxu0 0.0
        %374 = vmatpush2.msra.mxu0 0.0
        %375 = vmatprep.subr.mxu0 0.0
        %376 = vmatpush2.msra.mxu0 0.0
        %377 = vmatprep.subr.mxu0 0.0
        %378 = vmatpush2.msra.mxu0 0.0
        %379 = vmatprep.subr.mxu0 0.0
        %380 = vmatpush2.msra.mxu0 0.0
        %381 = vmatprep.subr.mxu0 0.0
        %382 = vmatpush2.msra.mxu0 0.0
        %383 = vmatprep.subr.mxu0 0.0
        %384 = vmatpush2.msra.mxu0 0.0
        %385 = vmatprep.subr.mxu0 0.0
        %386 = vmatpush2.msra.mxu0 0.0
        %387 = vmatprep.subr.mxu0 0.0
        %388 = vmatpush2.msra.mxu0 0.0
        %389 = vmatprep.subr.mxu0 0.0
        %390 = vmatpush2.msra.mxu0 0.0
        %391 = vmatprep.subr.mxu0 0.0
        %392 = vmatpush2.msra.mxu0 0.0
        %393 = vmatprep.subr.mxu0 0.0
        %394 = vmatpush2.msra.mxu0 0.0
        %395 = vmatprep.subr.mxu0 0.0
        %396 = vmatpush2.msra.mxu0 0.0
        %397 = vmatprep.subr.mxu0 0.0
        %398 = vmatpush2.msra.mxu0 0.0
        %399 = vmatprep.subr.mxu0 0.0
        %400 = vmatpush2.msra.mxu0 0.0
        %401 = vmatprep.mubr.f32.mxu0 0.0
        %402 = vmatmul.mubr.f32.gmra.mxu0 %v326
        %v403 = vpop.f32.mrf.mxu0
        %v404 = vadd.f32 %v307, %v403
        %v405 = vpop.f32.mrf.mxu0
        %v406 = vadd.f32 %v307, %v405
        %407 = vmatprep.mubr.f32.mxu0 0.0
        %408 = vmatmul.mubr.f32.gmra.mxu0 %v329
        %v409 = vpop.f32.mrf.mxu0
        %v410 = vadd.f32 %v312, %v409
        %v411 = vpop.f32.mrf.mxu0
        %v412 = vadd.f32 %v312, %v411
        %413 = vmatprep.mubr.f32.mxu0 0.0
        %414 = vmatmul.mubr.f32.gmra.mxu0 %v332
        %v415 = vpop.f32.mrf.mxu0
        %v416 = vadd.f32 %v317, %v415
        %v417 = vpop.f32.mrf.mxu0
        %v418 = vadd.f32 %v317, %v417
        %419 = vmatprep.mubr.f32.mxu0 0.0
        %420 = vmatmul.mubr.f32.gmra.mxu0 %v335
        %v421 = vpop.f32.mrf.mxu0
        %v422 = vadd.f32 %v322, %v421
        %v423 = vpop.f32.mrf.mxu0
        %v424 = vadd.f32 %v322, %v423
        %425 = vdwg.mxu0
        %426 = vmatprep.subr.mxu0 0.0
        %427 = vmatpush1.msra.mxu0 0.0
        %428 = vmatprep.subr.mxu0 0.0
        %429 = vmatpush1.msra.mxu0 0.0
        %430 = vmatprep.subr.mxu0 0.0
        %431 = vmatpush1.msra.mxu0 0.0
        %432 = vmatprep.subr.mxu0 0.0
        %433 = vmatpush1.msra.mxu0 0.0
        %434 = vmatprep.subr.mxu0 0.0
        %435 = vmatpush1.msra.mxu0 0.0
        %436 = vmatprep.subr.mxu0 0.0
        %437 = vmatpush1.msra.mxu0 0.0
        %438 = vmatprep.subr.mxu0 0.0
        %439 = vmatpush1.msra.mxu0 0.0
        %440 = vmatprep.subr.mxu0 0.0
        %441 = vmatpush1.msra.mxu0 0.0
        %442 = vmatprep.subr.mxu0 0.0
        %443 = vmatpush1.msra.mxu0 0.0
        %444 = vmatprep.subr.mxu0 0.0
        %445 = vmatpush1.msra.mxu0 0.0
        %446 = vmatprep.subr.mxu0 0.0
        %447 = vmatpush1.msra.mxu0 0.0
        %448 = vmatprep.subr.mxu0 0.0
        %449 = vmatpush1.msra.mxu0 0.0
        %450 = vmatprep.subr.mxu0 0.0
        %451 = vmatpush1.msra.mxu0 0.0
        %452 = vmatprep.subr.mxu0 0.0
        %453 = vmatpush1.msra.mxu0 0.0
        %454 = vmatprep.subr.mxu0 0.0
        %455 = vmatpush1.msra.mxu0 0.0
        %456 = vmatprep.subr.mxu0 %v283
        %457 = vmatpush1.msra.mxu0 %v282
        %458 = vmatprep.subr.mxu0 0.0
        %459 = vmatpush2.msra.mxu0 0.0
        %460 = vmatprep.subr.mxu0 0.0
        %461 = vmatpush2.msra.mxu0 0.0
        %462 = vmatprep.subr.mxu0 0.0
        %463 = vmatpush2.msra.mxu0 0.0
        %464 = vmatprep.subr.mxu0 0.0
        %465 = vmatpush2.msra.mxu0 0.0
        %466 = vmatprep.subr.mxu0 0.0
        %467 = vmatpush2.msra.mxu0 0.0
        %468 = vmatprep.subr.mxu0 0.0
        %469 = vmatpush2.msra.mxu0 0.0
        %470 = vmatprep.subr.mxu0 0.0
        %471 = vmatpush2.msra.mxu0 0.0
        %472 = vmatprep.subr.mxu0 0.0
        %473 = vmatpush2.msra.mxu0 0.0
        %474 = vmatprep.subr.mxu0 0.0
        %475 = vmatpush2.msra.mxu0 0.0
        %476 = vmatprep.subr.mxu0 0.0
        %477 = vmatpush2.msra.mxu0 0.0
        %478 = vmatprep.subr.mxu0 0.0
        %479 = vmatpush2.msra.mxu0 0.0
        %480 = vmatprep.subr.mxu0 0.0
        %481 = vmatpush2.msra.mxu0 0.0
        %482 = vmatprep.subr.mxu0 0.0
        %483 = vmatpush2.msra.mxu0 0.0
        %484 = vmatprep.subr.mxu0 0.0
        %485 = vmatpush2.msra.mxu0 0.0
        %486 = vmatprep.subr.mxu0 0.0
        %487 = vmatpush2.msra.mxu0 0.0
        %488 = vmatprep.subr.mxu0 0.0
        %489 = vmatpush2.msra.mxu0 0.0
        %490 = vmatprep.mubr.f32.mxu0 0.0
        %491 = vmatmul.mubr.f32.gmra.mxu0 %v326
        %v492 = vpop.f32.mrf.mxu0
        %v493 = vadd.f32 %v307, %v492
        %v494 = vpop.f32.mrf.mxu0
        %v495 = vadd.f32 %v307, %v494
        %496 = vmatprep.mubr.f32.mxu0 0.0
        %497 = vmatmul.mubr.f32.gmra.mxu0 %v329
        %v498 = vpop.f32.mrf.mxu0
        %v499 = vadd.f32 %v312, %v498
        %v500 = vpop.f32.mrf.mxu0
        %v501 = vadd.f32 %v312, %v500
        %502 = vmatprep.mubr.f32.mxu0 0.0
        %503 = vmatmul.mubr.f32.gmra.mxu0 %v332
        %v504 = vpop.f32.mrf.mxu0
        %v505 = vadd.f32 %v317, %v504
        %v506 = vpop.f32.mrf.mxu0
        %v507 = vadd.f32 %v317, %v506
        %508 = vmatprep.mubr.f32.mxu0 0.0
        %509 = vmatmul.mubr.f32.gmra.mxu0 %v335
        %v510 = vpop.f32.mrf.mxu0
        %v511 = vadd.f32 %v322, %v510
        %v512 = vpop.f32.mrf.mxu0
        %v513 = vadd.f32 %v322, %v512
        %514 = vdwg.mxu0
        %v515 = vtanh.pop %v404
        %v516 = vtanh.pop %v406
        %v517 = vtanh.pop %v493
        %v518 = vtanh.pop %v495
        %v519 = vtanh.pop %v410
        %v520 = vtanh.pop %v412
        %v521 = vtanh.pop %v499
        %v522 = vtanh.pop %v501
        %v523 = vtanh.pop %v416
        %v524 = vtanh.pop %v418
        %v525 = vtanh.pop %v505
        %v526 = vtanh.pop %v507
        %v527 = vtanh.pop %v422
        %v528 = vtanh.pop %v424
        %v529 = vtanh.pop %v511
        %v530 = vtanh.pop %v513
        %532 = vset.pattern.permute.xlu0 0
        %533 = vperm.xlu0 %532, %v298
        %v534 = vpop.permute.xlu0 %533
        %537 = vset.pattern.permute.xlu0 0
        %538 = vperm.xlu0 %537, %v299
        %v539 = vpop.permute.xlu0 %538
        %542 = vset.pattern.permute.xlu0 0
        %543 = vperm.xlu0 %542, %v300
        %v544 = vpop.permute.xlu0 %543
        %547 = vset.pattern.permute.xlu0 0
        %548 = vperm.xlu0 %547, %v301
        %v549 = vpop.permute.xlu0 %548
        %vm551 = vcmask 261120
        %v553 = vsel %vm551, %v288, 0
        %v556 = vsel %vm551, %v289, 0
        %v559 = vsel %vm551, %v290, 0
        %v562 = vsel %vm551, %v291, 0
        %564 = vmatprep.subr.mxu0 0.0
        %565 = vmatpush1.msra.mxu0 0.0
        %566 = vmatprep.subr.mxu0 0.0
        %567 = vmatpush1.msra.mxu0 0.0
        %568 = vmatprep.subr.mxu0 0.0
        %569 = vmatpush1.msra.mxu0 0.0
        %570 = vmatprep.subr.mxu0 0.0
        %571 = vmatpush1.msra.mxu0 0.0
        %572 = vmatprep.subr.mxu0 0.0
        %573 = vmatpush1.msra.mxu0 0.0
        %574 = vmatprep.subr.mxu0 0.0
        %575 = vmatpush1.msra.mxu0 0.0
        %576 = vmatprep.subr.mxu0 0.0
        %577 = vmatpush1.msra.mxu0 0.0
        %578 = vmatprep.subr.mxu0 0.0
        %579 = vmatpush1.msra.mxu0 0.0
        %580 = vmatprep.subr.mxu0 0.0
        %581 = vmatpush1.msra.mxu0 0.0
        %582 = vmatprep.subr.mxu0 0.0
        %583 = vmatpush1.msra.mxu0 0.0
        %584 = vmatprep.subr.mxu0 0.0
        %585 = vmatpush1.msra.mxu0 0.0
        %586 = vmatprep.subr.mxu0 0.0
        %587 = vmatpush1.msra.mxu0 0.0
        %588 = vmatprep.subr.mxu0 %v528
        %589 = vmatpush1.msra.mxu0 %v527
        %590 = vmatprep.subr.mxu0 %v524
        %591 = vmatpush1.msra.mxu0 %v523
        %592 = vmatprep.subr.mxu0 %v520
        %593 = vmatpush1.msra.mxu0 %v519
        %594 = vmatprep.subr.mxu0 %v516
        %595 = vmatpush1.msra.mxu0 %v515
        %596 = vmatprep.subr.mxu0 0.0
        %597 = vmatpush2.msra.mxu0 0.0
        %598 = vmatprep.subr.mxu0 0.0
        %599 = vmatpush2.msra.mxu0 0.0
        %600 = vmatprep.subr.mxu0 0.0
        %601 = vmatpush2.msra.mxu0 0.0
        %602 = vmatprep.subr.mxu0 0.0
        %603 = vmatpush2.msra.mxu0 0.0
        %604 = vmatprep.subr.mxu0 0.0
        %605 = vmatpush2.msra.mxu0 0.0
        %606 = vmatprep.subr.mxu0 0.0
        %607 = vmatpush2.msra.mxu0 0.0
        %608 = vmatprep.subr.mxu0 0.0
        %609 = vmatpush2.msra.mxu0 0.0
        %610 = vmatprep.subr.mxu0 0.0
        %611 = vmatpush2.msra.mxu0 0.0
        %612 = vmatprep.subr.mxu0 0.0
        %613 = vmatpush2.msra.mxu0 0.0
        %614 = vmatprep.subr.mxu0 0.0
        %615 = vmatpush2.msra.mxu0 0.0
        %616 = vmatprep.subr.mxu0 0.0
        %617 = vmatpush2.msra.mxu0 0.0
        %618 = vmatprep.subr.mxu0 0.0
        %619 = vmatpush2.msra.mxu0 0.0
        %620 = vmatprep.subr.mxu0 0.0
        %621 = vmatpush2.msra.mxu0 0.0
        %622 = vmatprep.subr.mxu0 0.0
        %623 = vmatpush2.msra.mxu0 0.0
        %624 = vmatprep.subr.mxu0 0.0
        %625 = vmatpush2.msra.mxu0 0.0
        %626 = vmatprep.subr.mxu0 0.0
        %627 = vmatpush2.msra.mxu0 0.0
        %628 = vmatprep.mubr.f32.mxu0 0.0
        %629 = vmatmul.mubr.f32.gmra.mxu0 %v553
        %v630 = vpop.f32.mrf.mxu0
        %v631 = vadd.f32 %v534, %v630
        %v632 = vpop.f32.mrf.mxu0
        %v633 = vadd.f32 %v534, %v632
        %634 = vmatprep.mubr.f32.mxu0 0.0
        %635 = vmatmul.mubr.f32.gmra.mxu0 %v556
        %v636 = vpop.f32.mrf.mxu0
        %v637 = vadd.f32 %v539, %v636
        %v638 = vpop.f32.mrf.mxu0
        %v639 = vadd.f32 %v539, %v638
        %640 = vmatprep.mubr.f32.mxu0 0.0
        %641 = vmatmul.mubr.f32.gmra.mxu0 %v559
        %v642 = vpop.f32.mrf.mxu0
        %v643 = vadd.f32 %v544, %v642
        %v644 = vpop.f32.mrf.mxu0
        %v645 = vadd.f32 %v544, %v644
        %646 = vmatprep.mubr.f32.mxu0 0.0
        %647 = vmatmul.mubr.f32.gmra.mxu0 %v562
        %v648 = vpop.f32.mrf.mxu0
        %v649 = vadd.f32 %v549, %v648
        %v650 = vpop.f32.mrf.mxu0
        %v651 = vadd.f32 %v549, %v650
        %652 = vdwg.mxu0
        %653 = vmatprep.subr.mxu0 0.0
        %654 = vmatpush1.msra.mxu0 0.0
        %655 = vmatprep.subr.mxu0 0.0
        %656 = vmatpush1.msra.mxu0 0.0
        %657 = vmatprep.subr.mxu0 0.0
        %658 = vmatpush1.msra.mxu0 0.0
        %659 = vmatprep.subr.mxu0 0.0
        %660 = vmatpush1.msra.mxu0 0.0
        %661 = vmatprep.subr.mxu0 0.0
        %662 = vmatpush1.msra.mxu0 0.0
        %663 = vmatprep.subr.mxu0 0.0
        %664 = vmatpush1.msra.mxu0 0.0
        %665 = vmatprep.subr.mxu0 0.0
        %666 = vmatpush1.msra.mxu0 0.0
        %667 = vmatprep.subr.mxu0 0.0
        %668 = vmatpush1.msra.mxu0 0.0
        %669 = vmatprep.subr.mxu0 0.0
        %670 = vmatpush1.msra.mxu0 0.0
        %671 = vmatprep.subr.mxu0 0.0
        %672 = vmatpush1.msra.mxu0 0.0
        %673 = vmatprep.subr.mxu0 0.0
        %674 = vmatpush1.msra.mxu0 0.0
        %675 = vmatprep.subr.mxu0 0.0
        %676 = vmatpush1.msra.mxu0 0.0
        %677 = vmatprep.subr.mxu0 %v530
        %678 = vmatpush1.msra.mxu0 %v529
        %679 = vmatprep.subr.mxu0 %v526
        %680 = vmatpush1.msra.mxu0 %v525
        %681 = vmatprep.subr.mxu0 %v522
        %682 = vmatpush1.msra.mxu0 %v521
        %683 = vmatprep.subr.mxu0 %v518
        %684 = vmatpush1.msra.mxu0 %v517
        %685 = vmatprep.subr.mxu0 0.0
        %686 = vmatpush2.msra.mxu0 0.0
        %687 = vmatprep.subr.mxu0 0.0
        %688 = vmatpush2.msra.mxu0 0.0
        %689 = vmatprep.subr.mxu0 0.0
        %690 = vmatpush2.msra.mxu0 0.0
        %691 = vmatprep.subr.mxu0 0.0
        %692 = vmatpush2.msra.mxu0 0.0
        %693 = vmatprep.subr.mxu0 0.0
        %694 = vmatpush2.msra.mxu0 0.0
        %695 = vmatprep.subr.mxu0 0.0
        %696 = vmatpush2.msra.mxu0 0.0
        %697 = vmatprep.subr.mxu0 0.0
        %698 = vmatpush2.msra.mxu0 0.0
        %699 = vmatprep.subr.mxu0 0.0
        %700 = vmatpush2.msra.mxu0 0.0
        %701 = vmatprep.subr.mxu0 0.0
        %702 = vmatpush2.msra.mxu0 0.0
        %703 = vmatprep.subr.mxu0 0.0
        %704 = vmatpush2.msra.mxu0 0.0
        %705 = vmatprep.subr.mxu0 0.0
        %706 = vmatpush2.msra.mxu0 0.0
        %707 = vmatprep.subr.mxu0 0.0
        %708 = vmatpush2.msra.mxu0 0.0
        %709 = vmatprep.subr.mxu0 0.0
        %710 = vmatpush2.msra.mxu0 0.0
        %711 = vmatprep.subr.mxu0 0.0
        %712 = vmatpush2.msra.mxu0 0.0
        %713 = vmatprep.subr.mxu0 0.0
        %714 = vmatpush2.msra.mxu0 0.0
        %715 = vmatprep.subr.mxu0 0.0
        %716 = vmatpush2.msra.mxu0 0.0
        %717 = vmatprep.mubr.f32.mxu0 0.0
        %718 = vmatmul.mubr.f32.gmra.mxu0 %v553
        %v719 = vpop.f32.mrf.mxu0
        %v720 = vadd.f32 %v534, %v719
        %v721 = vpop.f32.mrf.mxu0
        %v722 = vadd.f32 %v534, %v721
        %723 = vmatprep.mubr.f32.mxu0 0.0
        %724 = vmatmul.mubr.f32.gmra.mxu0 %v556
        %v725 = vpop.f32.mrf.mxu0
        %v726 = vadd.f32 %v539, %v725
        %v727 = vpop.f32.mrf.mxu0
        %v728 = vadd.f32 %v539, %v727
        %729 = vmatprep.mubr.f32.mxu0 0.0
        %730 = vmatmul.mubr.f32.gmra.mxu0 %v559
        %v731 = vpop.f32.mrf.mxu0
        %v732 = vadd.f32 %v544, %v731
        %v733 = vpop.f32.mrf.mxu0
        %v734 = vadd.f32 %v544, %v733
        %735 = vmatprep.mubr.f32.mxu0 0.0
        %736 = vmatmul.mubr.f32.gmra.mxu0 %v562
        %v737 = vpop.f32.mrf.mxu0
        %v738 = vadd.f32 %v549, %v737
        %v739 = vpop.f32.mrf.mxu0
        %v740 = vadd.f32 %v549, %v739
        %741 = vdwg.mxu0
        %v742 = vtanh.pop %v631
        %v743 = vtanh.pop %v633
        %v744 = vtanh.pop %v720
        %v745 = vtanh.pop %v722
        %v746 = vtanh.pop %v637
        %v747 = vtanh.pop %v639
        %v748 = vtanh.pop %v726
        %v749 = vtanh.pop %v728
        %v750 = vtanh.pop %v643
        %v751 = vtanh.pop %v645
        %v752 = vtanh.pop %v732
        %v753 = vtanh.pop %v734
        %v754 = vtanh.pop %v649
        %v755 = vtanh.pop %v651
        %v756 = vtanh.pop %v738
        %v757 = vtanh.pop %v740
        %759 = vset.pattern.permute.xlu0 0
        %760 = vperm.xlu0 %759, %v302
        %v761 = vpop.permute.xlu0 %760
        %764 = vset.pattern.permute.xlu0 0
        %765 = vperm.xlu0 %764, %v303
        %v766 = vpop.permute.xlu0 %765
        %v769 = vsel %vm551, %v292, 0
        %v772 = vsel %vm551, %v293, 0
        %774 = vmatprep.subr.mxu0 0.0
        %775 = vmatpush1.msra.mxu0 0.0
        %776 = vmatprep.subr.mxu0 0.0
        %777 = vmatpush1.msra.mxu0 0.0
        %778 = vmatprep.subr.mxu0 0.0
        %779 = vmatpush1.msra.mxu0 0.0
        %780 = vmatprep.subr.mxu0 0.0
        %781 = vmatpush1.msra.mxu0 0.0
        %782 = vmatprep.subr.mxu0 0.0
        %783 = vmatpush1.msra.mxu0 0.0
        %784 = vmatprep.subr.mxu0 0.0
        %785 = vmatpush1.msra.mxu0 0.0
        %786 = vmatprep.subr.mxu0 0.0
        %787 = vmatpush1.msra.mxu0 0.0
        %788 = vmatprep.subr.mxu0 0.0
        %789 = vmatpush1.msra.mxu0 0.0
        %790 = vmatprep.subr.mxu0 0.0
        %791 = vmatpush1.msra.mxu0 0.0
        %792 = vmatprep.subr.mxu0 0.0
        %793 = vmatpush1.msra.mxu0 0.0
        %794 = vmatprep.subr.mxu0 0.0
        %795 = vmatpush1.msra.mxu0 0.0
        %796 = vmatprep.subr.mxu0 0.0
        %797 = vmatpush1.msra.mxu0 0.0
        %798 = vmatprep.subr.mxu0 %v755
        %799 = vmatpush1.msra.mxu0 %v754
        %800 = vmatprep.subr.mxu0 %v751
        %801 = vmatpush1.msra.mxu0 %v750
        %802 = vmatprep.subr.mxu0 %v747
        %803 = vmatpush1.msra.mxu0 %v746
        %804 = vmatprep.subr.mxu0 %v743
        %805 = vmatpush1.msra.mxu0 %v742
        %806 = vmatprep.subr.mxu0 0.0
        %807 = vmatpush2.msra.mxu0 0.0
        %808 = vmatprep.subr.mxu0 0.0
        %809 = vmatpush2.msra.mxu0 0.0
        %810 = vmatprep.subr.mxu0 0.0
        %811 = vmatpush2.msra.mxu0 0.0
        %812 = vmatprep.subr.mxu0 0.0
        %813 = vmatpush2.msra.mxu0 0.0
        %814 = vmatprep.subr.mxu0 0.0
        %815 = vmatpush2.msra.mxu0 0.0
        %816 = vmatprep.subr.mxu0 0.0
        %817 = vmatpush2.msra.mxu0 0.0
        %818 = vmatprep.subr.mxu0 0.0
        %819 = vmatpush2.msra.mxu0 0.0
        %820 = vmatprep.subr.mxu0 0.0
        %821 = vmatpush2.msra.mxu0 0.0
        %822 = vmatprep.subr.mxu0 0.0
        %823 = vmatpush2.msra.mxu0 0.0
        %824 = vmatprep.subr.mxu0 0.0
        %825 = vmatpush2.msra.mxu0 0.0
        %826 = vmatprep.subr.mxu0 0.0
        %827 = vmatpush2.msra.mxu0 0.0
        %828 = vmatprep.subr.mxu0 0.0
        %829 = vmatpush2.msra.mxu0 0.0
        %830 = vmatprep.subr.mxu0 0.0
        %831 = vmatpush2.msra.mxu0 0.0
        %832 = vmatprep.subr.mxu0 0.0
        %833 = vmatpush2.msra.mxu0 0.0
        %834 = vmatprep.subr.mxu0 0.0
        %835 = vmatpush2.msra.mxu0 0.0
        %836 = vmatprep.subr.mxu0 0.0
        %837 = vmatpush2.msra.mxu0 0.0
        %838 = vmatprep.mubr.f32.mxu0 0.0
        %839 = vmatmul.mubr.f32.gmra.mxu0 %v769
        %v840 = vpop.f32.mrf.mxu0
        %v841 = vadd.f32 %v761, %v840
        %v842 = vpop.f32.mrf.mxu0
        %v843 = vadd.f32 %v761, %v842
        %844 = vmatprep.mubr.f32.mxu0 0.0
        %845 = vmatmul.mubr.f32.gmra.mxu0 %v772
        %v846 = vpop.f32.mrf.mxu0
        %v847 = vadd.f32 %v766, %v846
        %v848 = vpop.f32.mrf.mxu0
        %v849 = vadd.f32 %v766, %v848
        %850 = vdwg.mxu0
        %851 = vmatprep.subr.mxu0 0.0
        %852 = vmatpush1.msra.mxu0 0.0
        %853 = vmatprep.subr.mxu0 0.0
        %854 = vmatpush1.msra.mxu0 0.0
        %855 = vmatprep.subr.mxu0 0.0
        %856 = vmatpush1.msra.mxu0 0.0
        %857 = vmatprep.subr.mxu0 0.0
        %858 = vmatpush1.msra.mxu0 0.0
        %859 = vmatprep.subr.mxu0 0.0
        %860 = vmatpush1.msra.mxu0 0.0
        %861 = vmatprep.subr.mxu0 0.0
        %862 = vmatpush1.msra.mxu0 0.0
        %863 = vmatprep.subr.mxu0 0.0
        %864 = vmatpush1.msra.mxu0 0.0
        %865 = vmatprep.subr.mxu0 0.0
        %866 = vmatpush1.msra.mxu0 0.0
        %867 = vmatprep.subr.mxu0 0.0
        %868 = vmatpush1.msra.mxu0 0.0
        %869 = vmatprep.subr.mxu0 0.0
        %870 = vmatpush1.msra.mxu0 0.0
        %871 = vmatprep.subr.mxu0 0.0
        %872 = vmatpush1.msra.mxu0 0.0
        %873 = vmatprep.subr.mxu0 0.0
        %874 = vmatpush1.msra.mxu0 0.0
        %875 = vmatprep.subr.mxu0 %v757
        %876 = vmatpush1.msra.mxu0 %v756
        %877 = vmatprep.subr.mxu0 %v753
        %878 = vmatpush1.msra.mxu0 %v752
        %879 = vmatprep.subr.mxu0 %v749
        %880 = vmatpush1.msra.mxu0 %v748
        %881 = vmatprep.subr.mxu0 %v745
        %882 = vmatpush1.msra.mxu0 %v744
        %883 = vmatprep.subr.mxu0 0.0
        %884 = vmatpush2.msra.mxu0 0.0
        %885 = vmatprep.subr.mxu0 0.0
        %886 = vmatpush2.msra.mxu0 0.0
        %887 = vmatprep.subr.mxu0 0.0
        %888 = vmatpush2.msra.mxu0 0.0
        %889 = vmatprep.subr.mxu0 0.0
        %890 = vmatpush2.msra.mxu0 0.0
        %891 = vmatprep.subr.mxu0 0.0
        %892 = vmatpush2.msra.mxu0 0.0
        %893 = vmatprep.subr.mxu0 0.0
        %894 = vmatpush2.msra.mxu0 0.0
        %895 = vmatprep.subr.mxu0 0.0
        %896 = vmatpush2.msra.mxu0 0.0
        %897 = vmatprep.subr.mxu0 0.0
        %898 = vmatpush2.msra.mxu0 0.0
        %899 = vmatprep.subr.mxu0 0.0
        %900 = vmatpush2.msra.mxu0 0.0
        %901 = vmatprep.subr.mxu0 0.0
        %902 = vmatpush2.msra.mxu0 0.0
        %903 = vmatprep.subr.mxu0 0.0
        %904 = vmatpush2.msra.mxu0 0.0
        %905 = vmatprep.subr.mxu0 0.0
        %906 = vmatpush2.msra.mxu0 0.0
        %907 = vmatprep.subr.mxu0 0.0
        %908 = vmatpush2.msra.mxu0 0.0
        %909 = vmatprep.subr.mxu0 0.0
        %910 = vmatpush2.msra.mxu0 0.0
        %911 = vmatprep.subr.mxu0 0.0
        %912 = vmatpush2.msra.mxu0 0.0
        %913 = vmatprep.subr.mxu0 0.0
        %914 = vmatpush2.msra.mxu0 0.0
        %915 = vmatprep.mubr.f32.mxu0 0.0
        %916 = vmatmul.mubr.f32.gmra.mxu0 %v769
        %v917 = vpop.f32.mrf.mxu0
        %v918 = vadd.f32 %v761, %v917
        %v919 = vpop.f32.mrf.mxu0
        %v920 = vadd.f32 %v761, %v919
        %921 = vmatprep.mubr.f32.mxu0 0.0
        %922 = vmatmul.mubr.f32.gmra.mxu0 %v772
        %v923 = vpop.f32.mrf.mxu0
        %v924 = vadd.f32 %v766, %v923
        %v925 = vpop.f32.mrf.mxu0
        %v926 = vadd.f32 %v766, %v925
        %927 = vdwg.mxu0
        %928 = vst [vmem:[%s272] sm:$0xff] %v841
        %929 = vst [vmem:[%s272 + $0x8] sm:$0xff] %v843
        %930 = vst [vmem:[%s272 + $0x10] sm:$0xff] %v918
        %931 = vst [vmem:[%s272 + $0x18] sm:$0xff] %v920
        %932 = vst [vmem:[%s272 + $0x20] sm:$0xff] %v847
        %933 = vst [vmem:[%s272 + $0x28] sm:$0xff] %v849
        %934 = vst [vmem:[%s272 + $0x30] sm:$0xff] %v924
        %935 = vst [vmem:[%s272 + $0x38] sm:$0xff] %v926
        %s936 = sand.u32 %s181, 1
        %s937 = scalar_lea.sflag [#allocation3], %s936
        %s938 = sand.u32 %s181, 1
        %s939 = smul.addr %s938, 64
        %s940 = scalar_lea.vmem [#allocation2], %s939
        // Predicated region
        $region49: #{tpu_custom_call.1} parent=47 // pred_check
          %p941 = pneg %p191
        $region50: #{tpu_custom_call.1} parent=47 // pred_check_branch
          %943 = sbr.rel (%p941) target = $region52
        $region51: #{tpu_custom_call.1} parent=47 // pred_region
          %s944 = smul.u32 4, %s21
          %s946 = ssub.s32 1024, 1024
          %947 = vsyncadd %s937, %s946
          %s948 = smul.addr %s944, 128
          %s949 = scalar_lea.hbm %s7, %s948
          %s950 = sshll.u32 %s940, 4
          %s951 = int_to_ptr.vmem [resolvable:$true] %s950
          %956 = dma.vmem_to_hbm [thread:$0]  %s951, 1024, %s949, %s937, 512, 1024, 32
        $region52: #{tpu_custom_call.1} parent=47 // pred_fallthru
          _
      $region48: #{tpu_custom_call.1} parent=5 // pred_fallthru
        _
      %p957 = scmp.le.s32.totalorder 2, %s16
      // Predicated region
      $region53: #{tpu_custom_call.1} parent=5 // pred_check
        %p958 = pneg %p957
      $region54: #{tpu_custom_call.1} parent=5 // pred_check_branch
        %960 = sbr.rel (%p958) target = $region56
      $region55: #{tpu_custom_call.1} parent=5 // pred_region
        %s961 = ssub.s32 %s16, 2
        // Predicated region
        $region57: #{tpu_custom_call.1} parent=55 // pred_check
          %p962 = pneg %p197
        $region58: #{tpu_custom_call.1} parent=55 // pred_check_branch
          %964 = sbr.rel (%p962) target = $region60
        $region59: #{tpu_custom_call.1} parent=55 // pred_region
          %s965 = sand.u32 %s182, 1
          %s966 = scalar_lea.sflag [#allocation3], %s965
          %s967 = sand.u32 %s182, 1
          %s968 = smul.addr %s967, 64
          %s969 = scalar_lea.vmem [#allocation2], %s968
          %970 = dma.done %s966, 1024
        $region60: #{tpu_custom_call.1} parent=55 // pred_fallthru
          _
      $region56: #{tpu_custom_call.1} parent=5 // pred_fallthru
        _
    $region6: #{tpu_custom_call.1} parent=1 // loop_footer
      %s20 = sadd.s32 1, %s16
    $region7: #{tpu_custom_call.1} parent=1 // loop_footer_branch
      %15 = sbr.rel target = $region3
    $region8: #{tpu_custom_call.1} parent=1 // loop_exit
      _
    %971 = vsyncpa [#allocation3], 1
    %s972 = scalar_lea.sflag [#allocation3], 1
    %973 = vsyncpa %s972, 1

</llo_original>
